<compile_context>
chip_gen: v6e
topology: v6e:2x2x1
jax: 0.10.0
libtpu: 0.0.40
codegen_flags: <defaults>
</compile_context>

<pallas_src>
import functools

import jax
import jax.numpy as jnp
from jax.experimental import pallas as pl
from jax.experimental.pallas import tpu as pltpu

block_size = 8
LANE = 128      # vreg lane width
SUBLANE = 8     # vreg sublane width


def _round_up(x, m):
    return (x + m - 1) // m * m


def bigram_kernel(ids_ref, tgt_ref, wbig_ref, bf_ref, logits_ref, loss_ref,
                  *, batch, has_targets):
    """Fused embedding gather + folded affine as ONE matmul + (optional) mean CE.

    ids_ref    : VMEM (B_pad, block_size)      int32 token ids (rows >= batch are padding)
    tgt_ref    : VMEM (B_pad, 1)               int32 targets
    wbig_ref   : VMEM (block_size*V_pad, V_pad) f32 precomputed emb@w_fold table
    bf_ref     : VMEM (1, V_pad)               f32 folded bias (-1e30 in padded lanes)
    logits_ref : VMEM (B_pad, V_pad)           f32 output (lane-dense)
    loss_ref   : SMEM (1,1)                    f32 scalar mean CE
    """
    B_pad, T = ids_ref.shape
    V_pad = wbig_ref.shape[1]

    lane_iota = jax.lax.broadcasted_iota(jnp.int32, (B_pad, V_pad), 1)

    # One-hot operand: T lane-contiguous (B_pad, V_pad) blocks, each exactly one vreg
    # lane-tile wide -> concatenation crosses no (8,128) tile boundary.
    onehot_blocks = [
        (ids_ref[:, t:t + 1] == lane_iota).astype(jnp.float32) for t in range(T)
    ]
    onehot_full = jnp.concatenate(onehot_blocks, axis=1)          # (B_pad, T*V_pad)

    # Single MXU pass: K = T*V_pad (= 1024 at V_pad=128).
    logits = jnp.dot(onehot_full, wbig_ref[...],
                     preferred_element_type=jnp.float32) + bf_ref[...]
    logits_ref[...] = logits

    if has_targets:
        # Padded lanes hold -1e30 (from b_fold padding): they never win the max and
        # vanish in the exp-sum, so no lane mask is needed.
        m = jnp.max(logits, axis=-1, keepdims=True)
        lse = jnp.log(jnp.sum(jnp.exp(logits - m), axis=-1, keepdims=True)) + m
        picked = jnp.sum(jnp.where(lane_iota == tgt_ref[...], logits, 0.0),
                         axis=-1, keepdims=True)                  # (B_pad, 1)
        nll = lse - picked
        row_iota = jax.lax.broadcasted_iota(jnp.int32, (B_pad, 1), 0)
        nll = jnp.where(row_iota < batch, nll, 0.0)               # drop padded rows
        loss_ref[0, 0] = jnp.sum(nll) * (1.0 / batch)
    else:
        loss_ref[0, 0] = jnp.float32(0.0)


def prepare_params(params, vocab_size):
    """One-time parameter prep (NOT per forward call):
    fold hidden∘linear, fuse the embedding table into the folded weight, pad to lanes."""
    emb, w_h, b_h, w_l, b_l = params
    embedding_dim = emb.shape[1]
    v_pad = _round_up(vocab_size, LANE)
    hi = jax.lax.Precision.HIGHEST

    # (x @ Wh^T + bh) @ Wl^T + bl  ==  x @ (Wh^T @ Wl^T) + (bh @ Wl^T + bl)
    w_fold = jnp.dot(w_h.T, w_l.T, precision=hi)                          # (feat, vocab)
    b_fold = jnp.dot(b_h[None, :], w_l.T, precision=hi) + b_l[None, :]    # (1, vocab)

    w_fold = jnp.pad(w_fold, ((0, 0), (0, v_pad - vocab_size)))
    # Padded lanes get a large finite negative so the CE path needs no masking.
    b_fold = jnp.pad(b_fold, ((0, 0), (0, v_pad - vocab_size)),
                     constant_values=-1e30)
    emb_pad = jnp.pad(emb, ((0, v_pad - vocab_size), (0, 0)))             # (V_pad, E)

    # W_big[t*V_pad + v, :] = emb_pad[v, :] @ w_fold[t*E:(t+1)*E, :]
    w_big = jnp.concatenate(
        [jnp.dot(emb_pad,
                 w_fold[t * embedding_dim:(t + 1) * embedding_dim, :],
                 precision=hi)
         for t in range(block_size)],
        axis=0)                                                           # (T*V_pad, V_pad)

    # Quadratic-in-vocab table: keep it small relative to VMEM (64 MiB on v7x).
    assert w_big.size * 4 <= 16 * 1024 * 1024, (
        "vocab too large for the precomputed W_big table; "
        "use the two-matmul form with w_fold tiled along the lane axis")
    # TODO(synk): lane-tiled fallback path for V_pad >> 128 (v7x 64 MiB VMEM).

    return dict(w_big=w_big, b_fold=b_fold, vocab_size=vocab_size)


@functools.partial(jax.jit, static_argnames=("vocab_size", "has_targets"))
def _forward_jit(x_ids, tgt, w_big, b_fold, *, vocab_size, has_targets):
    B, T = x_ids.shape
    v_pad = w_big.shape[1]
    b_pad = _round_up(B, SUBLANE)

    ids = jnp.pad(x_ids, ((0, b_pad - B), (0, 0)))
    tgt2 = jnp.pad(tgt, (0, b_pad - B)).reshape(b_pad, 1)

    vmem = pl.BlockSpec(memory_space=pltpu.MemorySpace.VMEM)
    smem = pl.BlockSpec(memory_space=pltpu.MemorySpace.SMEM)

    kernel = functools.partial(bigram_kernel, batch=B, has_targets=has_targets)
    logits_pad, loss = pl.pallas_call(
        kernel,
        out_shape=(
            jax.ShapeDtypeStruct((b_pad, v_pad), jnp.float32),   # lane-dense logits
            jax.ShapeDtypeStruct((1, 1), jnp.float32),           # scalar loss (SMEM)
        ),
        in_specs=[vmem, vmem, vmem, vmem],
        out_specs=(vmem, smem),
    )(ids, tgt2, w_big, b_fold)

    return logits_pad[:B, :vocab_size], loss[0, 0]


def bigram_forward(x_ids, target_ids, prep):
    """x_ids: (B, block_size) int; target_ids: (B,) int or None.  Returns (logits, loss)."""
    B, T = x_ids.shape
    assert T == block_size
    has_targets = target_ids is not None
    tgt = (target_ids.astype(jnp.int32) if has_targets
           else jnp.zeros((B,), jnp.int32))
    logits, loss = _forward_jit(
        x_ids.astype(jnp.int32), tgt, prep["w_big"], prep["b_fold"],
        vocab_size=prep["vocab_size"], has_targets=has_targets)
    return logits, (loss if has_targets else None)


def init_params(key, vocab_size, embedding_dim):
    feat = embedding_dim * block_size
    k1, k2, k3, k4, k5 = jax.random.split(key, 5)
    emb = jax.random.normal(k1, (vocab_size, embedding_dim), jnp.float32)
    lim = 1.0 / jnp.sqrt(feat)
    w_h = jax.random.uniform(k2, (feat, feat), jnp.float32, -lim, lim)
    b_h = jax.random.uniform(k3, (feat,), jnp.float32, -lim, lim)
    w_l = jax.random.uniform(k4, (vocab_size, feat), jnp.float32, -lim, lim)
    b_l = jax.random.uniform(k5, (vocab_size,), jnp.float32, -lim, lim)
    return emb, w_h, b_h, w_l, b_l


if __name__ == "__main__":
    vocab_size = 65       # tinyshakespeare char vocab size
    embedding_dim = 32
    batch = 2

    key = jax.random.PRNGKey(0)
    kp, kx, kt = jax.random.split(key, 3)
    params = init_params(kp, vocab_size, embedding_dim)
    prep = prepare_params(params, vocab_size)

    x_ids = jax.random.randint(kx, (batch, block_size), 0, vocab_size, jnp.int32)
    target_ids = jax.random.randint(kt, (batch,), 0, vocab_size, jnp.int32)

    # training-style call (with targets)
    logits, loss = bigram_forward(x_ids, target_ids, prep)
    jax.block_until_ready((logits, loss))

    # inference-style call (no targets) exercises the CE-free compiled variant
    logits_inf, loss_inf = bigram_forward(x_ids, None, prep)
    jax.block_until_ready(logits_inf)
    assert loss_inf is None

    # pure-JAX reference in the module's original two-Linear form
    emb, w_h, b_h, w_l, b_l = params
    hi = jax.lax.Precision.HIGHEST
    xr = jnp.take(emb, x_ids, axis=0).reshape(batch, -1)
    hr = jnp.dot(xr, w_h.T, precision=hi) + b_h
    ref_logits = jnp.dot(hr, w_l.T, precision=hi) + b_l
    ref_loss = jnp.mean(
        jax.nn.logsumexp(ref_logits, axis=-1)
        - jnp.take_along_axis(ref_logits, target_ids[:, None], axis=-1)[:, 0])

    assert jnp.allclose(logits, ref_logits, atol=1e-3, rtol=1e-3)
    assert jnp.allclose(logits_inf, ref_logits, atol=1e-3, rtol=1e-3)
    assert jnp.allclose(loss, ref_loss, atol=1e-3, rtol=1e-3)

    print("KERNEL_OK")
</pallas_src>

<mosaic_0001>
module attributes {stable_mosaic.version = 11 : i64} {
  func.func @bigram_kernel(%arg0: memref<8x8xi32, #tpu.memory_space<vmem>>, %arg1: memref<8x1xi32, #tpu.memory_space<vmem>>, %arg2: memref<1024x128xf32, #tpu.memory_space<vmem>>, %arg3: memref<1x128xf32, #tpu.memory_space<vmem>>, %arg4: memref<8x128xf32, #tpu.memory_space<vmem>>, %arg5: memref<1x1xf32, #tpu.memory_space<smem>>) attributes {dimension_semantics = [], scalar_prefetch = 0 : i64, scratch_operands = 0 : i64, tpu.core_type = #tpu.core_type<tc>} {
    %0 = tpu.iota {dimensions = array<i32: 1>} : vector<8x128xi32>
    %c0 = arith.constant 0 : index
    %c0_0 = arith.constant 0 : index
    %1 = vector.load %arg0[%c0, %c0_0] : memref<8x8xi32, #tpu.memory_space<vmem>>, vector<8x1xi32>
    %2 = vector.broadcast %1 : vector<8x1xi32> to vector<8x128xi32>
    %3 = arith.cmpi eq, %2, %0 : vector<8x128xi32>
    %4 = arith.extui %3 : vector<8x128xi1> to vector<8x128xi32>
    %5 = arith.sitofp %4 : vector<8x128xi32> to vector<8x128xf32>
    %c0_1 = arith.constant 0 : index
    %c1 = arith.constant 1 : index
    %6 = vector.load %arg0[%c0_1, %c1] : memref<8x8xi32, #tpu.memory_space<vmem>>, vector<8x1xi32>
    %7 = vector.broadcast %6 : vector<8x1xi32> to vector<8x128xi32>
    %8 = arith.cmpi eq, %7, %0 : vector<8x128xi32>
    %9 = arith.extui %8 : vector<8x128xi1> to vector<8x128xi32>
    %10 = arith.sitofp %9 : vector<8x128xi32> to vector<8x128xf32>
    %c0_2 = arith.constant 0 : index
    %c2 = arith.constant 2 : index
    %11 = vector.load %arg0[%c0_2, %c2] : memref<8x8xi32, #tpu.memory_space<vmem>>, vector<8x1xi32>
    %12 = vector.broadcast %11 : vector<8x1xi32> to vector<8x128xi32>
    %13 = arith.cmpi eq, %12, %0 : vector<8x128xi32>
    %14 = arith.extui %13 : vector<8x128xi1> to vector<8x128xi32>
    %15 = arith.sitofp %14 : vector<8x128xi32> to vector<8x128xf32>
    %c0_3 = arith.constant 0 : index
    %c3 = arith.constant 3 : index
    %16 = vector.load %arg0[%c0_3, %c3] : memref<8x8xi32, #tpu.memory_space<vmem>>, vector<8x1xi32>
    %17 = vector.broadcast %16 : vector<8x1xi32> to vector<8x128xi32>
    %18 = arith.cmpi eq, %17, %0 : vector<8x128xi32>
    %19 = arith.extui %18 : vector<8x128xi1> to vector<8x128xi32>
    %20 = arith.sitofp %19 : vector<8x128xi32> to vector<8x128xf32>
    %c0_4 = arith.constant 0 : index
    %c4 = arith.constant 4 : index
    %21 = vector.load %arg0[%c0_4, %c4] : memref<8x8xi32, #tpu.memory_space<vmem>>, vector<8x1xi32>
    %22 = vector.broadcast %21 : vector<8x1xi32> to vector<8x128xi32>
    %23 = arith.cmpi eq, %22, %0 : vector<8x128xi32>
    %24 = arith.extui %23 : vector<8x128xi1> to vector<8x128xi32>
    %25 = arith.sitofp %24 : vector<8x128xi32> to vector<8x128xf32>
    %c0_5 = arith.constant 0 : index
    %c5 = arith.constant 5 : index
    %26 = vector.load %arg0[%c0_5, %c5] : memref<8x8xi32, #tpu.memory_space<vmem>>, vector<8x1xi32>
    %27 = vector.broadcast %26 : vector<8x1xi32> to vector<8x128xi32>
    %28 = arith.cmpi eq, %27, %0 : vector<8x128xi32>
    %29 = arith.extui %28 : vector<8x128xi1> to vector<8x128xi32>
    %30 = arith.sitofp %29 : vector<8x128xi32> to vector<8x128xf32>
    %c0_6 = arith.constant 0 : index
    %c6 = arith.constant 6 : index
    %31 = vector.load %arg0[%c0_6, %c6] : memref<8x8xi32, #tpu.memory_space<vmem>>, vector<8x1xi32>
    %32 = vector.broadcast %31 : vector<8x1xi32> to vector<8x128xi32>
    %33 = arith.cmpi eq, %32, %0 : vector<8x128xi32>
    %34 = arith.extui %33 : vector<8x128xi1> to vector<8x128xi32>
    %35 = arith.sitofp %34 : vector<8x128xi32> to vector<8x128xf32>
    %c0_7 = arith.constant 0 : index
    %c7 = arith.constant 7 : index
    %36 = vector.load %arg0[%c0_7, %c7] : memref<8x8xi32, #tpu.memory_space<vmem>>, vector<8x1xi32>
    %37 = vector.broadcast %36 : vector<8x1xi32> to vector<8x128xi32>
    %38 = arith.cmpi eq, %37, %0 : vector<8x128xi32>
    %39 = arith.extui %38 : vector<8x128xi1> to vector<8x128xi32>
    %40 = arith.sitofp %39 : vector<8x128xi32> to vector<8x128xf32>
    %41 = tpu.concatenate %5, %10, %15, %20, %25, %30, %35, %40 in 1 : vector<8x128xf32>, vector<8x128xf32>, vector<8x128xf32>, vector<8x128xf32>, vector<8x128xf32>, vector<8x128xf32>, vector<8x128xf32>, vector<8x128xf32> -> vector<8x1024xf32>
    %c0_8 = arith.constant 0 : index
    %c0_9 = arith.constant 0 : index
    %42 = vector.load %arg2[%c0_8, %c0_9] : memref<1024x128xf32, #tpu.memory_space<vmem>>, vector<1024x128xf32>
    %cst = arith.constant dense<0.000000e+00> : vector<8x128xf32>
    %43 = tpu.matmul %41, %42, %cst {dimension_numbers = #tpu.dot_dimension_numbers<[1], [0], [0], [1], [0, 0, 1, 1], [], []>} : vector<8x1024xf32>, vector<1024x128xf32>, vector<8x128xf32> -> vector<8x128xf32>
    %c0_10 = arith.constant 0 : index
    %c0_11 = arith.constant 0 : index
    %44 = vector.load %arg3[%c0_10, %c0_11] : memref<1x128xf32, #tpu.memory_space<vmem>>, vector<1x128xf32>
    %45 = vector.broadcast %44 : vector<1x128xf32> to vector<8x128xf32>
    %46 = arith.addf %43, %45 : vector<8x128xf32>
    %c0_12 = arith.constant 0 : index
    %c0_13 = arith.constant 0 : index
    %47 = vector.load %arg4[%c0_12, %c0_13] : memref<8x128xf32, #tpu.memory_space<vmem>>, vector<8x128xf32>
    tpu.vector_store %arg4[%c0_12, %c0_13], %46 {strides = array<i32>} : memref<8x128xf32, #tpu.memory_space<vmem>>, vector<8x128xf32>,
    %cst_14 = arith.constant dense<0xFF800000> : vector<8xf32>
    %48 = vector.multi_reduction <maximumf>, %46, %cst_14 [1] : vector<8x128xf32> to vector<8xf32>
    %49 = vector.shape_cast %48 : vector<8xf32> to vector<8x1xf32>
    %50 = vector.broadcast %49 : vector<8x1xf32> to vector<8x128xf32>
    %51 = arith.subf %46, %50 : vector<8x128xf32>
    %52 = math.exp %51 : vector<8x128xf32>
    %cst_15 = arith.constant dense<0.000000e+00> : vector<8xf32>
    %53 = vector.multi_reduction <add>, %52, %cst_15 [1] : vector<8x128xf32> to vector<8xf32>
    %54 = vector.shape_cast %53 : vector<8xf32> to vector<8x1xf32>
    %55 = math.log %54 : vector<8x1xf32>
    %56 = arith.addf %55, %49 : vector<8x1xf32>
    %c0_16 = arith.constant 0 : index
    %c0_17 = arith.constant 0 : index
    %57 = vector.load %arg1[%c0_16, %c0_17] : memref<8x1xi32, #tpu.memory_space<vmem>>, vector<8x1xi32>
    %58 = vector.broadcast %57 : vector<8x1xi32> to vector<8x128xi32>
    %59 = arith.cmpi eq, %0, %58 : vector<8x128xi32>
    %cst_18 = arith.constant 0.000000e+00 : f32
    %60 = vector.broadcast %cst_18 : f32 to vector<8x128xf32>
    %61 = arith.select %59, %46, %60 : vector<8x128xi1>, vector<8x128xf32>
    %cst_19 = arith.constant dense<0.000000e+00> : vector<8xf32>
    %62 = vector.multi_reduction <add>, %61, %cst_19 [1] : vector<8x128xf32> to vector<8xf32>
    %63 = vector.shape_cast %62 : vector<8xf32> to vector<8x1xf32>
    %64 = arith.subf %56, %63 : vector<8x1xf32>
    %65 = tpu.iota {dimensions = array<i32: 0>} : vector<8x1xi32>
    %c2_i32 = arith.constant 2 : i32
    %66 = vector.broadcast %c2_i32 : i32 to vector<8x1xi32>
    %67 = arith.cmpi slt, %65, %66 : vector<8x1xi32>
    %cst_20 = arith.constant 0.000000e+00 : f32
    %68 = vector.broadcast %cst_20 : f32 to vector<8x1xf32>
    %69 = arith.select %67, %64, %68 : vector<8x1xi1>, vector<8x1xf32>
    %70 = vector.shape_cast %69 : vector<8x1xf32> to vector<1x8x1xf32>
    %cst_21 = arith.constant dense<0.000000e+00> : vector<1xf32>
    %71 = vector.multi_reduction <add>, %70, %cst_21 [1, 2] : vector<1x8x1xf32> to vector<1xf32>
    %72 = vector.shape_cast %71 : vector<1xf32> to vector<1x1x1xf32>
    %73 = vector.extract %72[0, 0, 0] : f32 from vector<1x1x1xf32>
    %cst_22 = arith.constant 5.000000e-01 : f32
    %74 = arith.mulf %73, %cst_22 : f32
    %c0_23 = arith.constant 0 : index
    %c0_24 = arith.constant 0 : index
    %75 = memref.load %arg5[%c0_23, %c0_24] : memref<1x1xf32, #tpu.memory_space<smem>>
    memref.store %74, %arg5[%c0_23, %c0_24] : memref<1x1xf32, #tpu.memory_space<smem>>
    return
  }
}

</mosaic_0001>

<llo_original>
// kernel: _forward_jit.1
$region0: #{_forward_jit.1}
  #allocation0 [shape = 'u32[]', space=smem, size = 0x4, offset = 0x4, fixed_abs, tag = 'smem constant byte address 0x4 - core index']
  #allocation1 [shape = 'u32[144,128]{1,0:T(1,128)}', space=vmem, size = 0x12000, scoped, tag = 'internal scratch']
  %s0 = inlined_call_operand.vmem [shape: s32[8,8], index: 0, kind: input, shape index: {}]
  %s1 = inlined_call_operand.vmem [shape: s32[8,1], index: 1, kind: input, shape index: {}]
  %s2 = inlined_call_operand.hbm [shape: f32[1024,128], index: 2, kind: input, shape index: {}]
  %s3 = inlined_call_operand.vmem [shape: f32[1,128], index: 3, kind: input, shape index: {}]
  %s4 = inlined_call_operand.vmem [shape: f32[8,128], index: 4, kind: output, shape index: {0}]
  %s5 = inlined_call_operand.hbm [shape: f32[1,1], index: 5, kind: output, shape index: {1}]
  %6 = xla_tuple %s4, %s5
  %s7 = sld [smem:[#allocation0]]
  $region38: #{_forward_jit.1} parent=0
    _
  %s9 = ssub.s32 1, %s7
  %s10 = scalar_select 0, %s9, %s7
  $region1: #{_forward_jit.1} parent=0
    #allocation2 [shape = 'u8[524288]{0}', space=vmem, size = 0x80000, scoped, tag = 'input window, operand 2, single buffered']
    #allocation3 [shape = 's32[1]{0}', space=sflag, size = 0x4, scoped, tag = 'scoped memory for _forward_jit.1']
    #allocation4 [shape = 's32[1]{0}', space=sflag, size = 0x4, scoped, tag = 'scoped memory for _forward_jit.1']
    #allocation5 [shape = 'u8[512]{0}', space=smem, size = 0x200, scoped, tag = 'output window, operand 1, single buffered']
    %11 = vsyncpa [#allocation3], 0
    %12 = vsyncpa [#allocation4], 0
    // Predicated region
    $region2: #{_forward_jit.1} parent=1 // pred_check
      _
    $region3: #{_forward_jit.1} parent=1 // pred_check_branch
      %14 = sbr.rel (0) target = $region5
    $region4: #{_forward_jit.1} parent=1 // pred_region
      _
    $region5: #{_forward_jit.1} parent=1 // pred_fallthru
      _
    // Predicated region
    $region6: #{_forward_jit.1} parent=1 // pred_check
      _
    $region7: #{_forward_jit.1} parent=1 // pred_check_branch
      %16 = sbr.rel (0) target = $region9
    $region8: #{_forward_jit.1} parent=1 // pred_region
      _
    $region9: #{_forward_jit.1} parent=1 // pred_fallthru
      _
    // Predicated region
    $region10: #{_forward_jit.1} parent=1 // pred_check
      _
    $region11: #{_forward_jit.1} parent=1 // pred_check_branch
      %18 = sbr.rel (0) target = $region13
    $region12: #{_forward_jit.1} parent=1 // pred_region
      %s20 = ssub.s32 16384, 16384
      %21 = vsyncadd [#allocation3], %s20
      %s22 = sshll.u32 [#allocation2], 4
      %s23 = int_to_ptr.vmem [resolvable:$true] %s22
      %28 = dma.hbm_to_vmem [thread:$0]  %s2, 16384, %s23, [#allocation3], 128, 128, 8
    $region13: #{_forward_jit.1} parent=1 // pred_fallthru
      _
    // Predicated region
    $region14: #{_forward_jit.1} parent=1 // pred_check
      _
    $region15: #{_forward_jit.1} parent=1 // pred_check_branch
      %30 = sbr.rel (0) target = $region17
    $region16: #{_forward_jit.1} parent=1 // pred_region
      _
    $region17: #{_forward_jit.1} parent=1 // pred_fallthru
      _
    // Predicated region
    $region18: #{_forward_jit.1} parent=1 // pred_check
      _
    $region19: #{_forward_jit.1} parent=1 // pred_check_branch
      %32 = sbr.rel (0) target = $region21
    $region20: #{_forward_jit.1} parent=1 // pred_region
      %33 = dma.done [#allocation3], 16384
    $region21: #{_forward_jit.1} parent=1 // pred_fallthru
      _
    %v34 = vlaneseq
    %v35 = vand.u32 %v34, 127
    %v36 = vld [vmem:[%s0] sm:$0xff]
    %37 = vset.pattern.permute.xlu0 0
    %38 = vperm.xlu0 %37, %v36
    %v39 = vpop.permute.xlu0 %38
    %vm40 = vcmp.eq.s32.totalorder %v39, %v35
    %v41 = vsel %vm40, 1, 0
    %v42 = vcvt.s32.f32 %v41
    %43 = vset.pattern.permute.xlu0 1
    %44 = vperm.xlu0 %43, %v36
    %v45 = vpop.permute.xlu0 %44
    %vm46 = vcmp.eq.s32.totalorder %v45, %v35
    %v47 = vsel %vm46, 1, 0
    %v48 = vcvt.s32.f32 %v47
    %49 = vset.pattern.permute.xlu0 2
    %50 = vperm.xlu0 %49, %v36
    %v51 = vpop.permute.xlu0 %50
    %vm52 = vcmp.eq.s32.totalorder %v51, %v35
    %v53 = vsel %vm52, 1, 0
    %v54 = vcvt.s32.f32 %v53
    %55 = vset.pattern.permute.xlu0 3
    %56 = vperm.xlu0 %55, %v36
    %v57 = vpop.permute.xlu0 %56
    %vm58 = vcmp.eq.s32.totalorder %v57, %v35
    %v59 = vsel %vm58, 1, 0
    %v60 = vcvt.s32.f32 %v59
    %61 = vset.pattern.permute.xlu0 4
    %62 = vperm.xlu0 %61, %v36
    %v63 = vpop.permute.xlu0 %62
    %vm64 = vcmp.eq.s32.totalorder %v63, %v35
    %v65 = vsel %vm64, 1, 0
    %v66 = vcvt.s32.f32 %v65
    %67 = vset.pattern.permute.xlu0 5
    %68 = vperm.xlu0 %67, %v36
    %v69 = vpop.permute.xlu0 %68
    %vm70 = vcmp.eq.s32.totalorder %v69, %v35
    %v71 = vsel %vm70, 1, 0
    %v72 = vcvt.s32.f32 %v71
    %73 = vset.pattern.permute.xlu0 6
    %74 = vperm.xlu0 %73, %v36
    %v75 = vpop.permute.xlu0 %74
    %vm76 = vcmp.eq.s32.totalorder %v75, %v35
    %v77 = vsel %vm76, 1, 0
    %v78 = vcvt.s32.f32 %v77
    %79 = vset.pattern.permute.xlu0 7
    %80 = vperm.xlu0 %79, %v36
    %v81 = vpop.permute.xlu0 %80
    %vm82 = vcmp.eq.s32.totalorder %v81, %v35
    %v83 = vsel %vm82, 1, 0
    %v84 = vcvt.s32.f32 %v83
    %v85 = vld [vmem:[#allocation2] sm:$0xff]
    %v86 = vld [vmem:[#allocation2 + $0x8] sm:$0xff]
    %v87 = vld [vmem:[#allocation2 + $0x10] sm:$0xff]
    %v88 = vld [vmem:[#allocation2 + $0x18] sm:$0xff]
    %v89 = vld [vmem:[#allocation2 + $0x20] sm:$0xff]
    %v90 = vld [vmem:[#allocation2 + $0x28] sm:$0xff]
    %v91 = vld [vmem:[#allocation2 + $0x30] sm:$0xff]
    %v92 = vld [vmem:[#allocation2 + $0x38] sm:$0xff]
    %v93 = vld [vmem:[#allocation2 + $0x40] sm:$0xff]
    %v94 = vld [vmem:[#allocation2 + $0x48] sm:$0xff]
    %v95 = vld [vmem:[#allocation2 + $0x50] sm:$0xff]
    %v96 = vld [vmem:[#allocation2 + $0x58] sm:$0xff]
    %v97 = vld [vmem:[#allocation2 + $0x60] sm:$0xff]
    %v98 = vld [vmem:[#allocation2 + $0x68] sm:$0xff]
    %v99 = vld [vmem:[#allocation2 + $0x70] sm:$0xff]
    %v100 = vld [vmem:[#allocation2 + $0x78] sm:$0xff]
    %v101 = vld [vmem:[#allocation2 + $0x80] sm:$0xff]
    %v102 = vld [vmem:[#allocation2 + $0x88] sm:$0xff]
    %v103 = vld [vmem:[#allocation2 + $0x90] sm:$0xff]
    %v104 = vld [vmem:[#allocation2 + $0x98] sm:$0xff]
    %v105 = vld [vmem:[#allocation2 + $0xa0] sm:$0xff]
    %v106 = vld [vmem:[#allocation2 + $0xa8] sm:$0xff]
    %v107 = vld [vmem:[#allocation2 + $0xb0] sm:$0xff]
    %v108 = vld [vmem:[#allocation2 + $0xb8] sm:$0xff]
    %v109 = vld [vmem:[#allocation2 + $0xc0] sm:$0xff]
    %v110 = vld [vmem:[#allocation2 + $0xc8] sm:$0xff]
    %v111 = vld [vmem:[#allocation2 + $0xd0] sm:$0xff]
    %v112 = vld [vmem:[#allocation2 + $0xd8] sm:$0xff]
    %v113 = vld [vmem:[#allocation2 + $0xe0] sm:$0xff]
    %v114 = vld [vmem:[#allocation2 + $0xe8] sm:$0xff]
    %v115 = vld [vmem:[#allocation2 + $0xf0] sm:$0xff]
    %v116 = vld [vmem:[#allocation2 + $0xf8] sm:$0xff]
    %v117 = vld [vmem:[#allocation2 + $0x100] sm:$0xff]
    %v118 = vld [vmem:[#allocation2 + $0x108] sm:$0xff]
    %v119 = vld [vmem:[#allocation2 + $0x110] sm:$0xff]
    %v120 = vld [vmem:[#allocation2 + $0x118] sm:$0xff]
    %v121 = vld [vmem:[#allocation2 + $0x120] sm:$0xff]
    %v122 = vld [vmem:[#allocation2 + $0x128] sm:$0xff]
    %v123 = vld [vmem:[#allocation2 + $0x130] sm:$0xff]
    %v124 = vld [vmem:[#allocation2 + $0x138] sm:$0xff]
    %v125 = vld [vmem:[#allocation2 + $0x140] sm:$0xff]
    %v126 = vld [vmem:[#allocation2 + $0x148] sm:$0xff]
    %v127 = vld [vmem:[#allocation2 + $0x150] sm:$0xff]
    %v128 = vld [vmem:[#allocation2 + $0x158] sm:$0xff]
    %v129 = vld [vmem:[#allocation2 + $0x160] sm:$0xff]
    %v130 = vld [vmem:[#allocation2 + $0x168] sm:$0xff]
    %v131 = vld [vmem:[#allocation2 + $0x170] sm:$0xff]
    %v132 = vld [vmem:[#allocation2 + $0x178] sm:$0xff]
    %v133 = vld [vmem:[#allocation2 + $0x180] sm:$0xff]
    %v134 = vld [vmem:[#allocation2 + $0x188] sm:$0xff]
    %v135 = vld [vmem:[#allocation2 + $0x190] sm:$0xff]
    %v136 = vld [vmem:[#allocation2 + $0x198] sm:$0xff]
    %v137 = vld [vmem:[#allocation2 + $0x1a0] sm:$0xff]
    %v138 = vld [vmem:[#allocation2 + $0x1a8] sm:$0xff]
    %v139 = vld [vmem:[#allocation2 + $0x1b0] sm:$0xff]
    %v140 = vld [vmem:[#allocation2 + $0x1b8] sm:$0xff]
    %v141 = vld [vmem:[#allocation2 + $0x1c0] sm:$0xff]
    %v142 = vld [vmem:[#allocation2 + $0x1c8] sm:$0xff]
    %v143 = vld [vmem:[#allocation2 + $0x1d0] sm:$0xff]
    %v144 = vld [vmem:[#allocation2 + $0x1d8] sm:$0xff]
    %v145 = vld [vmem:[#allocation2 + $0x1e0] sm:$0xff]
    %v146 = vld [vmem:[#allocation2 + $0x1e8] sm:$0xff]
    %v147 = vld [vmem:[#allocation2 + $0x1f0] sm:$0xff]
    %v148 = vld [vmem:[#allocation2 + $0x1f8] sm:$0xff]
    %v149 = vld [vmem:[#allocation2 + $0x200] sm:$0xff]
    %v150 = vld [vmem:[#allocation2 + $0x208] sm:$0xff]
    %v151 = vld [vmem:[#allocation2 + $0x210] sm:$0xff]
    %v152 = vld [vmem:[#allocation2 + $0x218] sm:$0xff]
    %v153 = vld [vmem:[#allocation2 + $0x220] sm:$0xff]
    %v154 = vld [vmem:[#allocation2 + $0x228] sm:$0xff]
    %v155 = vld [vmem:[#allocation2 + $0x230] sm:$0xff]
    %v156 = vld [vmem:[#allocation2 + $0x238] sm:$0xff]
    %v157 = vld [vmem:[#allocation2 + $0x240] sm:$0xff]
    %v158 = vld [vmem:[#allocation2 + $0x248] sm:$0xff]
    %v159 = vld [vmem:[#allocation2 + $0x250] sm:$0xff]
    %v160 = vld [vmem:[#allocation2 + $0x258] sm:$0xff]
    %v161 = vld [vmem:[#allocation2 + $0x260] sm:$0xff]
    %v162 = vld [vmem:[#allocation2 + $0x268] sm:$0xff]
    %v163 = vld [vmem:[#allocation2 + $0x270] sm:$0xff]
    %v164 = vld [vmem:[#allocation2 + $0x278] sm:$0xff]
    %v165 = vld [vmem:[#allocation2 + $0x280] sm:$0xff]
    %v166 = vld [vmem:[#allocation2 + $0x288] sm:$0xff]
    %v167 = vld [vmem:[#allocation2 + $0x290] sm:$0xff]
    %v168 = vld [vmem:[#allocation2 + $0x298] sm:$0xff]
    %v169 = vld [vmem:[#allocation2 + $0x2a0] sm:$0xff]
    %v170 = vld [vmem:[#allocation2 + $0x2a8] sm:$0xff]
    %v171 = vld [vmem:[#allocation2 + $0x2b0] sm:$0xff]
    %v172 = vld [vmem:[#allocation2 + $0x2b8] sm:$0xff]
    %v173 = vld [vmem:[#allocation2 + $0x2c0] sm:$0xff]
    %v174 = vld [vmem:[#allocation2 + $0x2c8] sm:$0xff]
    %v175 = vld [vmem:[#allocation2 + $0x2d0] sm:$0xff]
    %v176 = vld [vmem:[#allocation2 + $0x2d8] sm:$0xff]
    %v177 = vld [vmem:[#allocation2 + $0x2e0] sm:$0xff]
    %v178 = vld [vmem:[#allocation2 + $0x2e8] sm:$0xff]
    %v179 = vld [vmem:[#allocation2 + $0x2f0] sm:$0xff]
    %v180 = vld [vmem:[#allocation2 + $0x2f8] sm:$0xff]
    %v181 = vld [vmem:[#allocation2 + $0x300] sm:$0xff]
    %v182 = vld [vmem:[#allocation2 + $0x308] sm:$0xff]
    %v183 = vld [vmem:[#allocation2 + $0x310] sm:$0xff]
    %v184 = vld [vmem:[#allocation2 + $0x318] sm:$0xff]
    %v185 = vld [vmem:[#allocation2 + $0x320] sm:$0xff]
    %v186 = vld [vmem:[#allocation2 + $0x328] sm:$0xff]
    %v187 = vld [vmem:[#allocation2 + $0x330] sm:$0xff]
    %v188 = vld [vmem:[#allocation2 + $0x338] sm:$0xff]
    %v189 = vld [vmem:[#allocation2 + $0x340] sm:$0xff]
    %v190 = vld [vmem:[#allocation2 + $0x348] sm:$0xff]
    %v191 = vld [vmem:[#allocation2 + $0x350] sm:$0xff]
    %v192 = vld [vmem:[#allocation2 + $0x358] sm:$0xff]
    %v193 = vld [vmem:[#allocation2 + $0x360] sm:$0xff]
    %v194 = vld [vmem:[#allocation2 + $0x368] sm:$0xff]
    %v195 = vld [vmem:[#allocation2 + $0x370] sm:$0xff]
    %v196 = vld [vmem:[#allocation2 + $0x378] sm:$0xff]
    %v197 = vld [vmem:[#allocation2 + $0x380] sm:$0xff]
    %v198 = vld [vmem:[#allocation2 + $0x388] sm:$0xff]
    %v199 = vld [vmem:[#allocation2 + $0x390] sm:$0xff]
    %v200 = vld [vmem:[#allocation2 + $0x398] sm:$0xff]
    %v201 = vld [vmem:[#allocation2 + $0x3a0] sm:$0xff]
    %v202 = vld [vmem:[#allocation2 + $0x3a8] sm:$0xff]
    %v203 = vld [vmem:[#allocation2 + $0x3b0] sm:$0xff]
    %v204 = vld [vmem:[#allocation2 + $0x3b8] sm:$0xff]
    %v205 = vld [vmem:[#allocation2 + $0x3c0] sm:$0xff]
    %v206 = vld [vmem:[#allocation2 + $0x3c8] sm:$0xff]
    %v207 = vld [vmem:[#allocation2 + $0x3d0] sm:$0xff]
    %v208 = vld [vmem:[#allocation2 + $0x3d8] sm:$0xff]
    %v209 = vld [vmem:[#allocation2 + $0x3e0] sm:$0xff]
    %v210 = vld [vmem:[#allocation2 + $0x3e8] sm:$0xff]
    %v211 = vld [vmem:[#allocation2 + $0x3f0] sm:$0xff]
    %v212 = vld [vmem:[#allocation2 + $0x3f8] sm:$0xff]
    %v213 = vld [vmem:[%s3] sm:$0x1]
    %v215 = vlaneseq
    %v216 = vshrl.u32 %v215, 7
    %v217 = vsub.s32 0, %v216
    %v218 = vrot.slane %v213, %v217
    %220 = vmatprep.subr.mxu0 0.0
    %221 = vmatpush1.msra.mxu0 %v100
    %222 = vmatprep.subr.mxu0 0.0
    %223 = vmatpush1.msra.mxu0 %v99
    %224 = vmatprep.subr.mxu0 0.0
    %225 = vmatpush1.msra.mxu0 %v98
    %226 = vmatprep.subr.mxu0 0.0
    %227 = vmatpush1.msra.mxu0 %v97
    %228 = vmatprep.subr.mxu0 0.0
    %229 = vmatpush1.msra.mxu0 %v96
    %230 = vmatprep.subr.mxu0 0.0
    %231 = vmatpush1.msra.mxu0 %v95
    %232 = vmatprep.subr.mxu0 0.0
    %233 = vmatpush1.msra.mxu0 %v94
    %234 = vmatprep.subr.mxu0 0.0
    %235 = vmatpush1.msra.mxu0 %v93
    %236 = vmatprep.subr.mxu0 0.0
    %237 = vmatpush1.msra.mxu0 %v92
    %238 = vmatprep.subr.mxu0 0.0
    %239 = vmatpush1.msra.mxu0 %v91
    %240 = vmatprep.subr.mxu0 0.0
    %241 = vmatpush1.msra.mxu0 %v90
    %242 = vmatprep.subr.mxu0 0.0
    %243 = vmatpush1.msra.mxu0 %v89
    %244 = vmatprep.subr.mxu0 0.0
    %245 = vmatpush1.msra.mxu0 %v88
    %246 = vmatprep.subr.mxu0 0.0
    %247 = vmatpush1.msra.mxu0 %v87
    %248 = vmatprep.subr.mxu0 0.0
    %249 = vmatpush1.msra.mxu0 %v86
    %250 = vmatprep.subr.mxu0 0.0
    %251 = vmatpush1.msra.mxu0 %v85
    %252 = vmatprep.subr.mxu0 0.0
    %253 = vmatpush2.msra.mxu0 %v116
    %254 = vmatprep.subr.mxu0 0.0
    %255 = vmatpush2.msra.mxu0 %v115
    %256 = vmatprep.subr.mxu0 0.0
    %257 = vmatpush2.msra.mxu0 %v114
    %258 = vmatprep.subr.mxu0 0.0
    %259 = vmatpush2.msra.mxu0 %v113
    %260 = vmatprep.subr.mxu0 0.0
    %261 = vmatpush2.msra.mxu0 %v112
    %262 = vmatprep.subr.mxu0 0.0
    %263 = vmatpush2.msra.mxu0 %v111
    %264 = vmatprep.subr.mxu0 0.0
    %265 = vmatpush2.msra.mxu0 %v110
    %266 = vmatprep.subr.mxu0 0.0
    %267 = vmatpush2.msra.mxu0 %v109
    %268 = vmatprep.subr.mxu0 0.0
    %269 = vmatpush2.msra.mxu0 %v108
    %270 = vmatprep.subr.mxu0 0.0
    %271 = vmatpush2.msra.mxu0 %v107
    %272 = vmatprep.subr.mxu0 0.0
    %273 = vmatpush2.msra.mxu0 %v106
    %274 = vmatprep.subr.mxu0 0.0
    %275 = vmatpush2.msra.mxu0 %v105
    %276 = vmatprep.subr.mxu0 0.0
    %277 = vmatpush2.msra.mxu0 %v104
    %278 = vmatprep.subr.mxu0 0.0
    %279 = vmatpush2.msra.mxu0 %v103
    %280 = vmatprep.subr.mxu0 0.0
    %281 = vmatpush2.msra.mxu0 %v102
    %282 = vmatprep.subr.mxu0 0.0
    %283 = vmatpush2.msra.mxu0 %v101
    %284 = vmatprep.mubr.f32.mxu0 %v48
    %285 = vmatmul.mubr.f32.gmra.mxu0 %v42
    %v286 = vpop.f32.mrf.mxu0
    %v287 = vadd.f32 %v218, %v286
    %v288 = vpop.f32.mrf.mxu0
    %289 = vdwg.mxu0
    %290 = vmatprep.subr.mxu0 0.0
    %291 = vmatpush1.msra.mxu0 %v132
    %292 = vmatprep.subr.mxu0 0.0
    %293 = vmatpush1.msra.mxu0 %v131
    %294 = vmatprep.subr.mxu0 0.0
    %295 = vmatpush1.msra.mxu0 %v130
    %296 = vmatprep.subr.mxu0 0.0
    %297 = vmatpush1.msra.mxu0 %v129
    %298 = vmatprep.subr.mxu0 0.0
    %299 = vmatpush1.msra.mxu0 %v128
    %300 = vmatprep.subr.mxu0 0.0
    %301 = vmatpush1.msra.mxu0 %v127
    %302 = vmatprep.subr.mxu0 0.0
    %303 = vmatpush1.msra.mxu0 %v126
    %304 = vmatprep.subr.mxu0 0.0
    %305 = vmatpush1.msra.mxu0 %v125
    %306 = vmatprep.subr.mxu0 0.0
    %307 = vmatpush1.msra.mxu0 %v124
    %308 = vmatprep.subr.mxu0 0.0
    %309 = vmatpush1.msra.mxu0 %v123
    %310 = vmatprep.subr.mxu0 0.0
    %311 = vmatpush1.msra.mxu0 %v122
    %312 = vmatprep.subr.mxu0 0.0
    %313 = vmatpush1.msra.mxu0 %v121
    %314 = vmatprep.subr.mxu0 0.0
    %315 = vmatpush1.msra.mxu0 %v120
    %316 = vmatprep.subr.mxu0 0.0
    %317 = vmatpush1.msra.mxu0 %v119
    %318 = vmatprep.subr.mxu0 0.0
    %319 = vmatpush1.msra.mxu0 %v118
    %320 = vmatprep.subr.mxu0 0.0
    %321 = vmatpush1.msra.mxu0 %v117
    %322 = vmatprep.subr.mxu0 0.0
    %323 = vmatpush2.msra.mxu0 %v148
    %324 = vmatprep.subr.mxu0 0.0
    %325 = vmatpush2.msra.mxu0 %v147
    %326 = vmatprep.subr.mxu0 0.0
    %327 = vmatpush2.msra.mxu0 %v146
    %328 = vmatprep.subr.mxu0 0.0
    %329 = vmatpush2.msra.mxu0 %v145
    %330 = vmatprep.subr.mxu0 0.0
    %331 = vmatpush2.msra.mxu0 %v144
    %332 = vmatprep.subr.mxu0 0.0
    %333 = vmatpush2.msra.mxu0 %v143
    %334 = vmatprep.subr.mxu0 0.0
    %335 = vmatpush2.msra.mxu0 %v142
    %336 = vmatprep.subr.mxu0 0.0
    %337 = vmatpush2.msra.mxu0 %v141
    %338 = vmatprep.subr.mxu0 0.0
    %339 = vmatpush2.msra.mxu0 %v140
    %340 = vmatprep.subr.mxu0 0.0
    %341 = vmatpush2.msra.mxu0 %v139
    %342 = vmatprep.subr.mxu0 0.0
    %343 = vmatpush2.msra.mxu0 %v138
    %344 = vmatprep.subr.mxu0 0.0
    %345 = vmatpush2.msra.mxu0 %v137
    %346 = vmatprep.subr.mxu0 0.0
    %347 = vmatpush2.msra.mxu0 %v136
    %348 = vmatprep.subr.mxu0 0.0
    %349 = vmatpush2.msra.mxu0 %v135
    %350 = vmatprep.subr.mxu0 0.0
    %351 = vmatpush2.msra.mxu0 %v134
    %352 = vmatprep.subr.mxu0 0.0
    %353 = vmatpush2.msra.mxu0 %v133
    %354 = vmatprep.mubr.f32.mxu0 %v60
    %355 = vmatmul.mubr.f32.gmra.mxu0 %v54
    %v356 = vpop.f32.mrf.mxu0
    %v357 = vadd.f32 %v287, %v356
    %v358 = vpop.f32.mrf.mxu0
    %359 = vdwg.mxu0
    %360 = vmatprep.subr.mxu0 0.0
    %361 = vmatpush1.msra.mxu0 %v164
    %362 = vmatprep.subr.mxu0 0.0
    %363 = vmatpush1.msra.mxu0 %v163
    %364 = vmatprep.subr.mxu0 0.0
    %365 = vmatpush1.msra.mxu0 %v162
    %366 = vmatprep.subr.mxu0 0.0
    %367 = vmatpush1.msra.mxu0 %v161
    %368 = vmatprep.subr.mxu0 0.0
    %369 = vmatpush1.msra.mxu0 %v160
    %370 = vmatprep.subr.mxu0 0.0
    %371 = vmatpush1.msra.mxu0 %v159
    %372 = vmatprep.subr.mxu0 0.0
    %373 = vmatpush1.msra.mxu0 %v158
    %374 = vmatprep.subr.mxu0 0.0
    %375 = vmatpush1.msra.mxu0 %v157
    %376 = vmatprep.subr.mxu0 0.0
    %377 = vmatpush1.msra.mxu0 %v156
    %378 = vmatprep.subr.mxu0 0.0
    %379 = vmatpush1.msra.mxu0 %v155
    %380 = vmatprep.subr.mxu0 0.0
    %381 = vmatpush1.msra.mxu0 %v154
    %382 = vmatprep.subr.mxu0 0.0
    %383 = vmatpush1.msra.mxu0 %v153
    %384 = vmatprep.subr.mxu0 0.0
    %385 = vmatpush1.msra.mxu0 %v152
    %386 = vmatprep.subr.mxu0 0.0
    %387 = vmatpush1.msra.mxu0 %v151
    %388 = vmatprep.subr.mxu0 0.0
    %389 = vmatpush1.msra.mxu0 %v150
    %390 = vmatprep.subr.mxu0 0.0
    %391 = vmatpush1.msra.mxu0 %v149
    %392 = vmatprep.subr.mxu0 0.0
    %393 = vmatpush2.msra.mxu0 %v180
    %394 = vmatprep.subr.mxu0 0.0
    %395 = vmatpush2.msra.mxu0 %v179
    %396 = vmatprep.subr.mxu0 0.0
    %397 = vmatpush2.msra.mxu0 %v178
    %398 = vmatprep.subr.mxu0 0.0
    %399 = vmatpush2.msra.mxu0 %v177
    %400 = vmatprep.subr.mxu0 0.0
    %401 = vmatpush2.msra.mxu0 %v176
    %402 = vmatprep.subr.mxu0 0.0
    %403 = vmatpush2.msra.mxu0 %v175
    %404 = vmatprep.subr.mxu0 0.0
    %405 = vmatpush2.msra.mxu0 %v174
    %406 = vmatprep.subr.mxu0 0.0
    %407 = vmatpush2.msra.mxu0 %v173
    %408 = vmatprep.subr.mxu0 0.0
    %409 = vmatpush2.msra.mxu0 %v172
    %410 = vmatprep.subr.mxu0 0.0
    %411 = vmatpush2.msra.mxu0 %v171
    %412 = vmatprep.subr.mxu0 0.0
    %413 = vmatpush2.msra.mxu0 %v170
    %414 = vmatprep.subr.mxu0 0.0
    %415 = vmatpush2.msra.mxu0 %v169
    %416 = vmatprep.subr.mxu0 0.0
    %417 = vmatpush2.msra.mxu0 %v168
    %418 = vmatprep.subr.mxu0 0.0
    %419 = vmatpush2.msra.mxu0 %v167
    %420 = vmatprep.subr.mxu0 0.0
    %421 = vmatpush2.msra.mxu0 %v166
    %422 = vmatprep.subr.mxu0 0.0
    %423 = vmatpush2.msra.mxu0 %v165
    %424 = vmatprep.mubr.f32.mxu0 %v72
    %425 = vmatmul.mubr.f32.gmra.mxu0 %v66
    %v426 = vpop.f32.mrf.mxu0
    %v427 = vadd.f32 %v357, %v426
    %v428 = vpop.f32.mrf.mxu0
    %429 = vdwg.mxu0
    %430 = vmatprep.subr.mxu0 0.0
    %431 = vmatpush1.msra.mxu0 %v196
    %432 = vmatprep.subr.mxu0 0.0
    %433 = vmatpush1.msra.mxu0 %v195
    %434 = vmatprep.subr.mxu0 0.0
    %435 = vmatpush1.msra.mxu0 %v194
    %436 = vmatprep.subr.mxu0 0.0
    %437 = vmatpush1.msra.mxu0 %v193
    %438 = vmatprep.subr.mxu0 0.0
    %439 = vmatpush1.msra.mxu0 %v192
    %440 = vmatprep.subr.mxu0 0.0
    %441 = vmatpush1.msra.mxu0 %v191
    %442 = vmatprep.subr.mxu0 0.0
    %443 = vmatpush1.msra.mxu0 %v190
    %444 = vmatprep.subr.mxu0 0.0
    %445 = vmatpush1.msra.mxu0 %v189
    %446 = vmatprep.subr.mxu0 0.0
    %447 = vmatpush1.msra.mxu0 %v188
    %448 = vmatprep.subr.mxu0 0.0
    %449 = vmatpush1.msra.mxu0 %v187
    %450 = vmatprep.subr.mxu0 0.0
    %451 = vmatpush1.msra.mxu0 %v186
    %452 = vmatprep.subr.mxu0 0.0
    %453 = vmatpush1.msra.mxu0 %v185
    %454 = vmatprep.subr.mxu0 0.0
    %455 = vmatpush1.msra.mxu0 %v184
    %456 = vmatprep.subr.mxu0 0.0
    %457 = vmatpush1.msra.mxu0 %v183
    %458 = vmatprep.subr.mxu0 0.0
    %459 = vmatpush1.msra.mxu0 %v182
    %460 = vmatprep.subr.mxu0 0.0
    %461 = vmatpush1.msra.mxu0 %v181
    %462 = vmatprep.subr.mxu0 0.0
    %463 = vmatpush2.msra.mxu0 %v212
    %464 = vmatprep.subr.mxu0 0.0
    %465 = vmatpush2.msra.mxu0 %v211
    %466 = vmatprep.subr.mxu0 0.0
    %467 = vmatpush2.msra.mxu0 %v210
    %468 = vmatprep.subr.mxu0 0.0
    %469 = vmatpush2.msra.mxu0 %v209
    %470 = vmatprep.subr.mxu0 0.0
    %471 = vmatpush2.msra.mxu0 %v208
    %472 = vmatprep.subr.mxu0 0.0
    %473 = vmatpush2.msra.mxu0 %v207
    %474 = vmatprep.subr.mxu0 0.0
    %475 = vmatpush2.msra.mxu0 %v206
    %476 = vmatprep.subr.mxu0 0.0
    %477 = vmatpush2.msra.mxu0 %v205
    %478 = vmatprep.subr.mxu0 0.0
    %479 = vmatpush2.msra.mxu0 %v204
    %480 = vmatprep.subr.mxu0 0.0
    %481 = vmatpush2.msra.mxu0 %v203
    %482 = vmatprep.subr.mxu0 0.0
    %483 = vmatpush2.msra.mxu0 %v202
    %484 = vmatprep.subr.mxu0 0.0
    %485 = vmatpush2.msra.mxu0 %v201
    %486 = vmatprep.subr.mxu0 0.0
    %487 = vmatpush2.msra.mxu0 %v200
    %488 = vmatprep.subr.mxu0 0.0
    %489 = vmatpush2.msra.mxu0 %v199
    %490 = vmatprep.subr.mxu0 0.0
    %491 = vmatpush2.msra.mxu0 %v198
    %492 = vmatprep.subr.mxu0 0.0
    %493 = vmatpush2.msra.mxu0 %v197
    %494 = vmatprep.mubr.f32.mxu0 %v84
    %495 = vmatmul.mubr.f32.gmra.mxu0 %v78
    %v496 = vpop.f32.mrf.mxu0
    %v497 = vadd.f32 %v427, %v496
    %v498 = vpop.f32.mrf.mxu0
    %499 = vdwg.mxu0
    %500 = vst [vmem:[%s4] sm:$0xff] %v497
    %501 = vmax.xlane.f32.xlu0 %v497
    %v502 = vpop.xlane.xlu0 %501
    %v503 = vsub.f32 %v497, %v502
    %v504 = vmul.f32 %v503, 1.442695
    %v505 = vpow.pop %v504
    %506 = vadd.xlane.f32.xlu0 %v505
    %v507 = vpop.xlane.xlu0 %506
    %v508 = vlog2.pop %v507
    %v509 = vmul.f32 %v508, 0.6931472
    %v510 = vadd.f32 %v509, %v502
    %v511 = vld [vmem:[%s1] sm:$0xff]
    %512 = vset.pattern.permute.xlu0 0
    %513 = vperm.xlu0 %512, %v511
    %v514 = vpop.permute.xlu0 %513
    %vm515 = vcmp.eq.s32.totalorder %v35, %v514
    %v516 = vsel %vm515, %v497, 0.0
    %517 = vadd.xlane.f32.xlu0 %v516
    %v518 = vpop.xlane.xlu0 %517
    %v519 = vsub.f32 %v510, %v518
    %v520 = vlaneseq
    %v521 = vshrl.u32 %v520, 7
    %vm522 = vcmp.lt.s32.totalorder %v521, 2
    %v523 = vsel %vm522, %v519, 0.0
    %vm524 = vcmask 7168
    %v525 = vsel %vm524, %v523, 0.0
    %526 = vadd.xlane.f32.xlu0 %v525
    %v527 = vpop.xlane.xlu0 %526
    %v528 = vrot.slane %v527, 4
    %v529 = vadd.f32 %v527, %v528
    %v530 = vrot.slane %v529, 2
    %v531 = vadd.f32 %v529, %v530
    %v532 = vrot.slane %v531, 1
    %v533 = vadd.f32 %v531, %v532
    %s534 = vtos %v533
    %s535 = smul.f32 %s534, 0.5
    %s536 = scalar_lea.smem [#allocation5], 0
    %537 = sst [smem:[%s536]] %s535
    // Predicated region
    $region22: #{_forward_jit.1} parent=1 // pred_check
      _
    $region23: #{_forward_jit.1} parent=1 // pred_check_branch
      %539 = sbr.rel (0) target = $region25
    $region24: #{_forward_jit.1} parent=1 // pred_region
      _
    $region25: #{_forward_jit.1} parent=1 // pred_fallthru
      _
    // Predicated region
    $region26: #{_forward_jit.1} parent=1 // pred_check
      _
    $region27: #{_forward_jit.1} parent=1 // pred_check_branch
      %541 = sbr.rel (0) target = $region29
    $region28: #{_forward_jit.1} parent=1 // pred_region
      %s543 = ssub.s32 16, 16
      %544 = vsyncadd [#allocation4], %s543
      %547 = dma.smem_to_hbm [#allocation5], 16, %s5, [#allocation4]
    $region29: #{_forward_jit.1} parent=1 // pred_fallthru
      _
    // Predicated region
    $region30: #{_forward_jit.1} parent=1 // pred_check
      _
    $region31: #{_forward_jit.1} parent=1 // pred_check_branch
      %549 = sbr.rel (0) target = $region33
    $region32: #{_forward_jit.1} parent=1 // pred_region
      _
    $region33: #{_forward_jit.1} parent=1 // pred_fallthru
      _
    // Predicated region
    $region34: #{_forward_jit.1} parent=1 // pred_check
      _
    $region35: #{_forward_jit.1} parent=1 // pred_check_branch
      %551 = sbr.rel (0) target = $region37
    $region36: #{_forward_jit.1} parent=1 // pred_region
      %552 = dma.done [#allocation4], 16
    $region37: #{_forward_jit.1} parent=1 // pred_fallthru
      _
    %553 = sfence
    %554 = vsyncpa [#allocation3], 1
    %555 = vsyncpa [#allocation4], 1

</llo_original>
